<compile_context>
chip_gen: v6e
topology: v6e:2x2x1
jax: 0.10.0
libtpu: 0.0.40
codegen_flags: <defaults>
</compile_context>

<pallas_src>
import functools

import jax
import jax.numpy as jnp
import numpy as np
from jax.experimental import pallas as pl
from jax.experimental.pallas import tpu as pltpu

_BN_EPS = 1e-5


def _round_up(x, m):
    return ((x + m - 1) // m) * m


def _tpu_vmem_capacity():
    """Per-core VMEM capacity, with a conservative (v7x) fallback."""
    try:
        info = pltpu.get_tpu_info()
        cap = getattr(info, "vmem_capacity_bytes", None)
        if cap:
            return int(cap)
    except Exception:
        pass
    return 64 * 1024 * 1024


_VMEM_CAP = _tpu_vmem_capacity()
# Tight-ish derived limit: plenty for these kernels, leaves headroom for
# Mosaic internal scratch on v7x's 64 MiB cores, larger tiles on 128 MiB chips.
_VMEM_LIMIT = min(_VMEM_CAP * 3 // 4, 96 * 1024 * 1024)
_TM_MAX = 1024 if _VMEM_CAP >= (100 << 20) else 512   # v5e/v6e : v7x


def _pick_tm(M, tm_max, min_steps=4):
    """Row tile for the 1x1 matmuls: as large as possible but keep >= 4 grid
    steps so each TensorCore (2 on v7x) has >= 2 pipelined steps."""
    tm = min(tm_max, _round_up(M, 8))
    while tm > 8 and pl.cdiv(M, tm) < min_steps:
        tm = _round_up(max(8, tm // 2), 8)
    return tm


def _pick_rb(Ho, Ew, N, target_lb=512, min_steps=4):
    """Output rows per conv2 grid step: ~512 flattened pseudo-rows per step,
    shrunk until the (N, nR) grid has >= 4 total steps."""
    rb = max(1, min(Ho, target_lb // Ew))
    while rb > 1 and N * pl.cdiv(Ho, rb) < min_steps:
        rb = pl.cdiv(rb, 2)
    return rb


# ----------------------------- Pallas kernels ------------------------------ #

def _mm_bias_act_kernel(x_ref, w_ref, b_ref, o_ref, *, relu):
    # (tm, K) @ (K, Cout) -> + bias (BN folded into weights) -> optional ReLU
    acc = jnp.dot(x_ref[...], w_ref[...], preferred_element_type=jnp.float32)
    acc = acc + b_ref[...]
    if relu:
        acc = jnp.maximum(acc, 0.0)
    o_ref[...] = acc.astype(o_ref.dtype)


def _mm_bias_res_relu_kernel(x_ref, w_ref, b_ref, r_ref, o_ref):
    # conv3 with identity shortcut: (x @ w) + b + residual(f32) -> ReLU
    acc = jnp.dot(x_ref[...], w_ref[...], preferred_element_type=jnp.float32)
    acc = acc + b_ref[...] + r_ref[...]
    o_ref[...] = jnp.maximum(acc, 0.0).astype(o_ref.dtype)


def _mm_dual_bias_relu_kernel(x_ref, w_ref, xs_ref, wsc_ref, b_ref, o_ref):
    # conv3 with projection shortcut fused in: x@w3 + xs@wsc + (b3+bsc) -> ReLU
    acc = jnp.dot(x_ref[...], w_ref[...], preferred_element_type=jnp.float32)
    acc = acc + jnp.dot(xs_ref[...], wsc_ref[...],
                        preferred_element_type=jnp.float32)
    acc = acc + b_ref[...]
    o_ref[...] = jnp.maximum(acc, 0.0).astype(o_ref.dtype)


def _conv2_3x3_kernel(x_ref, w_ref, b_ref, o_ref, *, stride, rb, Ew):
    # x_ref: (s, R, 3*Cin)  row-phase images, dw taps pre-concat along channels
    # w_ref: (3, 3*Cin, Cout) per-dh weights (BN scale folded), bf16
    # b_ref: (1, Cout) f32 ; o_ref: (1, rb*Ew, Cout)
    # Three K=3*Cin dots per step, all loads sublane-aligned (Ew % 8 == 0).
    s = stride
    Lb = rb * Ew
    base = pl.program_id(1) * Lb
    Cout = w_ref.shape[-1]
    acc = jnp.zeros((Lb, Cout), jnp.float32)
    for dh in range(3):
        row0 = pl.multiple_of(base + (dh // s) * Ew, 8)
        acc = acc + jnp.dot(x_ref[dh % s, pl.ds(row0, Lb), :], w_ref[dh],
                            preferred_element_type=jnp.float32)
    acc = jnp.maximum(acc + b_ref[...], 0.0)
    o_ref[0] = acc.astype(o_ref.dtype)


# ------------------------------ Pallas wrappers ----------------------------- #

def fused_matmul(x2d, w, bias, *, residual=None, shortcut=None, relu=True,
                 out_dtype=jnp.bfloat16):
    """out = relu?((x2d @ w) + bias [+ residual(f32) | + xs @ wsc]).

    Matmul operands are cast to bf16 at the kernel boundary, accumulation is
    f32 on the MXU, bias / residual stay f32.  BN scale is expected to be
    pre-folded into `w` (and `wsc`); for the projection path pass b3+bsc as
    a single pre-summed bias.
    """
    M, K = x2d.shape
    Cout = w.shape[1]
    tm = _pick_tm(M, _TM_MAX)
    grid = (pl.cdiv(M, tm),)

    x2d = x2d.astype(jnp.bfloat16)
    w = w.astype(jnp.bfloat16)
    bias = bias.reshape(1, Cout).astype(jnp.float32)

    x_spec = pl.BlockSpec((tm, K), lambda i: (i, 0))
    w_spec = pl.BlockSpec((K, Cout), lambda i: (0, 0))
    v_spec = pl.BlockSpec((1, Cout), lambda i: (0, 0))
    o_spec = pl.BlockSpec((tm, Cout), lambda i: (i, 0))

    if shortcut is not None:
        xs, wsc = shortcut
        Ksc = xs.shape[1]
        kernel = _mm_dual_bias_relu_kernel
        in_specs = [x_spec, w_spec,
                    pl.BlockSpec((tm, Ksc), lambda i: (i, 0)),
                    pl.BlockSpec((Ksc, Cout), lambda i: (0, 0)),
                    v_spec]
        args = (x2d, w, xs.astype(jnp.bfloat16), wsc.astype(jnp.bfloat16), bias)
    elif residual is not None:
        kernel = _mm_bias_res_relu_kernel
        in_specs = [x_spec, w_spec, v_spec,
                    pl.BlockSpec((tm, Cout), lambda i: (i, 0))]
        args = (x2d, w, bias, residual.astype(jnp.float32))
    else:
        kernel = functools.partial(_mm_bias_act_kernel, relu=relu)
        in_specs = [x_spec, w_spec, v_spec]
        args = (x2d, w, bias)

    return pl.pallas_call(
        kernel,
        out_shape=jax.ShapeDtypeStruct((M, Cout), out_dtype),
        grid_spec=pltpu.PrefetchScalarGridSpec(
            num_scalar_prefetch=0,
            grid=grid,
            in_specs=in_specs,
            out_specs=o_spec),
        compiler_params=pltpu.CompilerParams(
            dimension_semantics=("parallel",),
            vmem_limit_bytes=_VMEM_LIMIT),
    )(*args)


def conv2_3x3(x_nhwc, w_oihw, bias, scale, stride):
    """3x3 conv (padding=1, stride) + folded BN + ReLU as one Pallas kernel.

    The wrapper builds `stride` "row-phase" images whose channel axis carries
    the three dw taps pre-concatenated (K = 3*Cin); the kernel then does 3
    aligned dots per row block.  Returns the Ew/Hp-padded output slab
    ((N, Hp*Ew, Cout) bf16) plus the geometry (Ho, Wo, Hp, Ew).
    """
    N, H, W, Cin = x_nhwc.shape
    Cout = w_oihw.shape[0]
    s = stride
    Ho = (H - 1) // s + 1
    Wo = (W - 1) // s + 1
    e = 2 // s                           # max tap offset inside a phase image
    Ew = _round_up(Wo + e, 8)            # lane-flattened row width, 8-aligned
    rb = _pick_rb(Ho, Ew, N)             # output rows per grid step
    nR = pl.cdiv(Ho, rb)
    Hp = nR * rb                         # row-padded output height
    Lb = rb * Ew                         # pseudo-rows per grid step
    R = (Hp + e) * Ew                    # pseudo-rows per row-phase image

    # zero-pad so every (q, dw) strided tap view below is exactly (Hp+e, Ew)
    pad_r = s * (Hp + e) - H - 1
    pad_c = (s * Ew - s + 3) - W - 1
    xp = jnp.pad(x_nhwc, ((0, 0), (1, pad_r), (1, pad_c), (0, 0)))

    # Row-phase images with the 3 dw taps pre-concatenated along channels:
    #   Y[n, q, i, j, dw*Cin + c] = xp[n, s*i + q, s*j + dw, c]
    ys = []
    for q in range(s):
        taps = [xp[:, q::s, dw::s, :][:, :Hp + e, :Ew, :] for dw in range(3)]
        ys.append(jnp.concatenate(taps, axis=-1))
    y = jnp.stack(ys, axis=1)                              # (N, s, Hp+e, Ew, 3*Cin)
    y = y.reshape(N * s, R, 3 * Cin).astype(jnp.bfloat16)

    # per-dh matmul weights, dw taps stacked along K, BN scale folded in
    w_t = jnp.transpose(w_oihw, (2, 3, 1, 0)) * scale.reshape(1, 1, 1, Cout)
    w_cat = w_t.reshape(3, 3 * Cin, Cout).astype(jnp.bfloat16)
    bias2 = bias.reshape(1, Cout).astype(jnp.float32)

    out = pl.pallas_call(
        functools.partial(_conv2_3x3_kernel, stride=s, rb=rb, Ew=Ew),
        out_shape=jax.ShapeDtypeStruct((N, Hp * Ew, Cout), jnp.bfloat16),
        grid_spec=pltpu.PrefetchScalarGridSpec(
            num_scalar_prefetch=0,
            grid=(N, nR),
            in_specs=[pl.BlockSpec((s, R, 3 * Cin), lambda n, r: (n, 0, 0)),
                      pl.BlockSpec((3, 3 * Cin, Cout), lambda n, r: (0, 0, 0)),
                      pl.BlockSpec((1, Cout), lambda n, r: (0, 0))],
            out_specs=pl.BlockSpec((1, Lb, Cout), lambda n, r: (n, r, 0))),
        compiler_params=pltpu.CompilerParams(
            dimension_semantics=("parallel", "parallel"),
            vmem_limit_bytes=_VMEM_LIMIT),
    )(y, w_cat, bias2)
    return out, (Ho, Wo, Hp, Ew)


# ------------------------------- JAX glue ---------------------------------- #

def _fold_bn(bn):
    scale = bn["gamma"] / jnp.sqrt(bn["var"] + _BN_EPS)
    bias = bn["beta"] - bn["mean"] * scale
    return scale, bias


def bottleneck_forward(x_nchw, params, stride):
    """Pallas-backed Bottleneck forward (inference BN).  NCHW in / NCHW out."""
    expansion = 4
    x = jnp.transpose(x_nchw, (0, 2, 3, 1))          # NCHW -> NHWC (f32)
    N, H, W, Cin = x.shape
    planes = params["w1_oihw"].shape[0]
    cout = expansion * planes

    # conv1 (1x1) + bn1 + relu  (BN scale folded into the weight columns)
    s1, b1 = _fold_bn(params["bn1"])
    w1 = params["w1_oihw"][:, :, 0, 0].T * s1[None, :]          # (Cin, planes)
    out1 = fused_matmul(x.reshape(N * H * W, Cin), w1, b1, relu=True)
    out1 = out1.reshape(N, H, W, planes)                        # bf16

    # conv2 (3x3, stride, pad=1) + bn2 + relu  (row-tiled Pallas kernel)
    s2, b2 = _fold_bn(params["bn2"])
    out2, (Ho, Wo, Hp, Ew) = conv2_3x3(out1, params["w2_oihw"], b2, s2, stride)
    out2 = out2.reshape(N * Hp * Ew, planes)        # padded slab, no HBM strip

    # conv3 (1x1) + bn3 + shortcut + relu on the padded slab; garbage columns /
    # rows are dropped once at the end, fused with the NHWC->NCHW transpose.
    s3, b3 = _fold_bn(params["bn3"])
    w3 = params["w3_oihw"][:, :, 0, 0].T * s3[None, :]          # (planes, 4p)

    if "wsc_oihw" in params:
        ssc, bsc = _fold_bn(params["bnsc"])
        wsc = params["wsc_oihw"][:, :, 0, 0].T * ssc[None, :]   # (Cin, 4p)
        xs = x[:, ::stride, ::stride, :]                        # (N, Ho, Wo, Cin)
        xs = jnp.pad(xs, ((0, 0), (0, Hp - Ho), (0, Ew - Wo), (0, 0)))
        xs = xs.reshape(N * Hp * Ew, Cin)
        out = fused_matmul(out2, w3, b3 + bsc, shortcut=(xs, wsc),
                           out_dtype=jnp.float32)
    else:
        # identity shortcut: residual stays f32 end-to-end
        res = jnp.pad(x, ((0, 0), (0, Hp - H), (0, Ew - W), (0, 0)))
        res = res.reshape(N * Hp * Ew, cout)
        out = fused_matmul(out2, w3, b3, residual=res, out_dtype=jnp.float32)

    out = out.reshape(N, Hp, Ew, cout)[:, :Ho, :Wo, :]
    return jnp.transpose(out, (0, 3, 1, 2))          # NHWC -> NCHW


# ------------------------- deterministic parameters ------------------------ #

def init_params(key, in_planes, planes, stride):
    expansion = 4
    keys = jax.random.split(key, 8)

    def w(k, shape):
        return 0.1 * jax.random.normal(k, shape, jnp.float32)

    def bn(k, c):
        k1, k2, k3, k4 = jax.random.split(k, 4)
        return dict(
            gamma=1.0 + 0.1 * jax.random.normal(k1, (c,), jnp.float32),
            beta=0.1 * jax.random.normal(k2, (c,), jnp.float32),
            mean=0.1 * jax.random.normal(k3, (c,), jnp.float32),
            var=0.9 + 0.1 * jnp.abs(jax.random.normal(k4, (c,), jnp.float32)),
        )

    p = {
        "w1_oihw": w(keys[0], (planes, in_planes, 1, 1)),
        "bn1": bn(keys[1], planes),
        "w2_oihw": w(keys[2], (planes, planes, 3, 3)),
        "bn2": bn(keys[3], planes),
        "w3_oihw": w(keys[4], (expansion * planes, planes, 1, 1)),
        "bn3": bn(keys[5], expansion * planes),
    }
    if stride != 1 or in_planes != expansion * planes:
        p["wsc_oihw"] = w(keys[6], (expansion * planes, in_planes, 1, 1))
        p["bnsc"] = bn(keys[7], expansion * planes)
    return p


# --------------------------- pure-JAX reference ----------------------------- #

def ref_forward(x, p, stride):
    def conv(x, w, s=1, pad=0):
        return jax.lax.conv_general_dilated(
            x, w, (s, s), [(pad, pad), (pad, pad)],
            dimension_numbers=("NCHW", "OIHW", "NCHW"))

    def bn(x, d):
        g = d["gamma"][None, :, None, None]
        b = d["beta"][None, :, None, None]
        m = d["mean"][None, :, None, None]
        v = d["var"][None, :, None, None]
        return (x - m) / jnp.sqrt(v + _BN_EPS) * g + b

    out = jax.nn.relu(bn(conv(x, p["w1_oihw"]), p["bn1"]))
    out = jax.nn.relu(bn(conv(out, p["w2_oihw"], stride, 1), p["bn2"]))
    out = bn(conv(out, p["w3_oihw"]), p["bn3"])
    if "wsc_oihw" in p:
        sc = bn(conv(x, p["wsc_oihw"], stride, 0), p["bnsc"])
    else:
        sc = x
    return jax.nn.relu(out + sc)


# ----------------------------------- main ----------------------------------- #

if __name__ == "__main__":
    key = jax.random.PRNGKey(0)

    def quantize(a):
        # keep test inputs/weights exactly bf16-representable so the comparison
        # against the f32 reference isolates kernel-side error (intermediate
        # bf16 storage / accumulation order), not input quantization noise.
        return a.astype(jnp.bfloat16).astype(jnp.float32)

    configs = [
        # (in_planes, planes, stride, N, H, W): projection- and identity-shortcut paths
        (8, 4, 2, 2, 16, 16),
        (16, 4, 1, 2, 8, 8),
    ]
    for idx, (in_planes, planes, stride, N, H, W) in enumerate(configs):
        kx, kp = jax.random.split(jax.random.fold_in(key, idx))
        x = quantize(jax.random.normal(kx, (N, in_planes, H, W), jnp.float32))
        params = init_params(kp, in_planes, planes, stride)
        for name in ("w1_oihw", "w2_oihw", "w3_oihw", "wsc_oihw"):
            if name in params:
                params[name] = quantize(params[name])

        out = jax.block_until_ready(bottleneck_forward(x, params, stride))
        ref = ref_forward(x, params, stride)
        np.testing.assert_allclose(np.asarray(out), np.asarray(ref),
                                   rtol=3e-2, atol=3e-2)

    print("KERNEL_OK")
</pallas_src>

<mosaic_0001>
module attributes {stable_mosaic.version = 11 : i64} {
  func.func @_mm_bias_act_kernel(%arg0: i32, %arg1: memref<128x8xbf16, #tpu.memory_space<vmem>>, %arg2: memref<8x4xbf16, #tpu.memory_space<vmem>>, %arg3: memref<1x4xf32, #tpu.memory_space<vmem>>, %arg4: memref<128x4xbf16, #tpu.memory_space<vmem>>) attributes {dimension_semantics = [#tpu.dimension_semantics<parallel>], iteration_bounds = array<i64: 4>, scalar_prefetch = 0 : i64, scratch_operands = 0 : i64, tpu.core_type = #tpu.core_type<tc>, window_params = [{transform_indices = @transform_0, window_bounds = array<i64: 128, 8>}, {pipeline_mode = #tpu.pipeline_mode<synchronous>, transform_indices = @transform_1, window_bounds = array<i64: 8, 4>}, {pipeline_mode = #tpu.pipeline_mode<synchronous>, transform_indices = @transform_2, window_bounds = array<i64: 1, 4>}, {transform_indices = @transform_3, window_bounds = array<i64: 128, 4>}]} {
    %c0 = arith.constant 0 : index
    %c0_0 = arith.constant 0 : index
    %0 = vector.load %arg1[%c0, %c0_0] : memref<128x8xbf16, #tpu.memory_space<vmem>>, vector<128x8xbf16>
    %c0_1 = arith.constant 0 : index
    %c0_2 = arith.constant 0 : index
    %1 = vector.load %arg2[%c0_1, %c0_2] : memref<8x4xbf16, #tpu.memory_space<vmem>>, vector<8x4xbf16>
    %cst = arith.constant dense<0.000000e+00> : vector<128x4xf32>
    %2 = tpu.matmul %0, %1, %cst {dimension_numbers = #tpu.dot_dimension_numbers<[1], [0], [0], [1], [0, 0, 1, 1], [], []>} : vector<128x8xbf16>, vector<8x4xbf16>, vector<128x4xf32> -> vector<128x4xf32>
    %c0_3 = arith.constant 0 : index
    %c0_4 = arith.constant 0 : index
    %3 = vector.load %arg3[%c0_3, %c0_4] : memref<1x4xf32, #tpu.memory_space<vmem>>, vector<1x4xf32>
    %4 = vector.broadcast %3 : vector<1x4xf32> to vector<128x4xf32>
    %5 = arith.addf %2, %4 : vector<128x4xf32>
    %cst_5 = arith.constant 0.000000e+00 : f32
    %6 = vector.broadcast %cst_5 : f32 to vector<128x4xf32>
    %7 = arith.maximumf %5, %6 : vector<128x4xf32>
    %8 = arith.truncf %7 : vector<128x4xf32> to vector<128x4xbf16>
    %c0_6 = arith.constant 0 : index
    %c0_7 = arith.constant 0 : index
    %9 = vector.load %arg4[%c0_6, %c0_7] : memref<128x4xbf16, #tpu.memory_space<vmem>>, vector<128x4xbf16>
    tpu.vector_store %arg4[%c0_6, %c0_7], %8 {strides = array<i32>} : memref<128x4xbf16, #tpu.memory_space<vmem>>, vector<128x4xbf16>,
    return
  }
  func.func @transform_0(%arg0: i32) -> (i32, i32) {
    %c0_i32 = arith.constant 0 : i32
    %c0_i32_0 = arith.constant 0 : i32
    return %arg0, %c0_i32 : i32, i32
  }
  func.func @transform_1(%arg0: i32) -> (i32, i32) {
    %c0_i32 = arith.constant 0 : i32
    %c0_i32_0 = arith.constant 0 : i32
    %c0_i32_1 = arith.constant 0 : i32
    return %c0_i32, %c0_i32_0 : i32, i32
  }
  func.func @transform_2(%arg0: i32) -> (i32, i32) {
    %c0_i32 = arith.constant 0 : i32
    %c0_i32_0 = arith.constant 0 : i32
    %c0_i32_1 = arith.constant 0 : i32
    return %c0_i32, %c0_i32_0 : i32, i32
  }
  func.func @transform_3(%arg0: i32) -> (i32, i32) {
    %c0_i32 = arith.constant 0 : i32
    %c0_i32_0 = arith.constant 0 : i32
    return %arg0, %c0_i32 : i32, i32
  }
}

</mosaic_0001>

<llo_original>
// kernel: tpu_custom_call.1
$region0: #{tpu_custom_call.1}
  #allocation0 [shape = 'u32[]', space=smem, size = 0x4, offset = 0x4, fixed_abs, tag = 'smem constant byte address 0x4 - core index']
  #allocation1 [shape = 'u32[144,128]{1,0:T(1,128)}', space=vmem, size = 0x12000, scoped, tag = 'internal scratch']
  %s0 = inlined_call_operand.vmem [shape: bf16[512,8], index: 0, kind: input, shape index: {}]
  %s1 = inlined_call_operand.vmem [shape: bf16[8,4], index: 1, kind: input, shape index: {}]
  %s2 = inlined_call_operand.vmem [shape: f32[1,4], index: 2, kind: input, shape index: {}]
  %s3 = inlined_call_operand.vmem [shape: bf16[512,4], index: 3, kind: output, shape index: {}]
  %s4 = sld [smem:[#allocation0]]
  $region45: #{tpu_custom_call.1} parent=0
    _
  %s6 = ssub.s32 1, %s4
  %s7 = scalar_select 0, %s6, %s4
  loop: start=0, step=1, limit=6
  $region2: #{tpu_custom_call.1} parent=0 // loop_pre_header
    _
  $region3: #{tpu_custom_call.1} parent=0 // loop_header
    %s9 = sphi 0, %s13
    %p10 = scmp.ge.s32.totalorder %s9, 6
    %s19 = sphi 0, %s21
    %s22 = sphi 0, %s19
    %s23 = sphi 0, %s22
    %s39 = sphi 0, %s23
    %s43 = sphi 0, %s43
    %s45 = sphi 0, %s43
    %s46 = sphi 0, %s45
    %s60 = sphi 0, %s46
    %s64 = sphi 0, %s64
    %s66 = sphi 0, %s64
    %s67 = sphi 0, %s66
    %s81 = sphi 0, %s67
    %s87 = sphi 0, %s89
    %s90 = sphi 0, %s87
    %s91 = sphi 0, %s90
    %s107 = sphi 0, %s91
  $region4: #{tpu_custom_call.1} parent=0 // loop_header_branch
    %12 = sbr.rel (%p10) target = $region8
  $region5: #{tpu_custom_call.1} parent=0 // loop_body
    %s14 = ssub.s32 %s9, 1
    %s15 = ssub.s32 %s9, 2
    %s16 = sadd.s32 %s9, 1
    %s17 = ssub.s32 %s9, %s16
    %p18 = scmp.eq.s32.totalorder %s17, 0
    %s20 = sadd.s32 %s19, 1
    %s21 = scalar_select %p18, %s19, %s20
    %p24 = pneg %p18
    %p25 = scmp.eq.s32.totalorder %s9, 3
    %p26 = por %p24, %p25
    %p27 = scmp.ne.s32.totalorder %s19, %s22
    %p28 = scmp.eq.s32.totalorder %s9, 0
    %p29 = por %p27, %p28
    %p30 = scmp.ne.s32.totalorder %s19, %s22
    %p31 = scmp.eq.s32.totalorder %s14, 3
    %p32 = por %p30, %p31
    %p33 = scmp.ne.s32.totalorder %s22, %s23
    %p34 = scmp.eq.s32.totalorder %s14, 0
    %p35 = por %p33, %p34
    %p36 = scmp.ne.s32.totalorder %s22, %s23
    %p37 = scmp.eq.s32.totalorder %s15, 3
    %p38 = por %p36, %p37
    %p40 = scmp.ne.s32.totalorder %s23, %s39
    %p41 = scmp.eq.s32.totalorder %s15, 0
    %p42 = por %p40, %p41
    %s44 = sadd.s32 %s43, 1
    %p47 = scmp.eq.s32.totalorder %s9, 3
    %p48 = scmp.ne.s32.totalorder %s43, %s45
    %p49 = scmp.eq.s32.totalorder %s9, 0
    %p50 = por %p48, %p49
    %p51 = scmp.ne.s32.totalorder %s43, %s45
    %p52 = scmp.eq.s32.totalorder %s14, 3
    %p53 = por %p51, %p52
    %p54 = scmp.ne.s32.totalorder %s45, %s46
    %p55 = scmp.eq.s32.totalorder %s14, 0
    %p56 = por %p54, %p55
    %p57 = scmp.ne.s32.totalorder %s45, %s46
    %p58 = scmp.eq.s32.totalorder %s15, 3
    %p59 = por %p57, %p58
    %p61 = scmp.ne.s32.totalorder %s46, %s60
    %p62 = scmp.eq.s32.totalorder %s15, 0
    %p63 = por %p61, %p62
    %s65 = sadd.s32 %s64, 1
    %p68 = scmp.eq.s32.totalorder %s9, 3
    %p69 = scmp.ne.s32.totalorder %s64, %s66
    %p70 = scmp.eq.s32.totalorder %s9, 0
    %p71 = por %p69, %p70
    %p72 = scmp.ne.s32.totalorder %s64, %s66
    %p73 = scmp.eq.s32.totalorder %s14, 3
    %p74 = por %p72, %p73
    %p75 = scmp.ne.s32.totalorder %s66, %s67
    %p76 = scmp.eq.s32.totalorder %s14, 0
    %p77 = por %p75, %p76
    %p78 = scmp.ne.s32.totalorder %s66, %s67
    %p79 = scmp.eq.s32.totalorder %s15, 3
    %p80 = por %p78, %p79
    %p82 = scmp.ne.s32.totalorder %s67, %s81
    %p83 = scmp.eq.s32.totalorder %s15, 0
    %p84 = por %p82, %p83
    %s85 = ssub.s32 %s9, %s16
    %p86 = scmp.eq.s32.totalorder %s85, 0
    %s88 = sadd.s32 %s87, 1
    %s89 = scalar_select %p86, %s87, %s88
    %p92 = pneg %p86
    %p93 = scmp.eq.s32.totalorder %s9, 3
    %p94 = por %p92, %p93
    %p95 = scmp.ne.s32.totalorder %s87, %s90
    %p96 = scmp.eq.s32.totalorder %s9, 0
    %p97 = por %p95, %p96
    %p98 = scmp.ne.s32.totalorder %s87, %s90
    %p99 = scmp.eq.s32.totalorder %s14, 3
    %p100 = por %p98, %p99
    %p101 = scmp.ne.s32.totalorder %s90, %s91
    %p102 = scmp.eq.s32.totalorder %s14, 0
    %p103 = por %p101, %p102
    %p104 = scmp.ne.s32.totalorder %s90, %s91
    %p105 = scmp.eq.s32.totalorder %s15, 3
    %p106 = por %p104, %p105
    %p108 = scmp.ne.s32.totalorder %s91, %s107
    %p109 = scmp.eq.s32.totalorder %s15, 0
    %p110 = por %p108, %p109
    %p111 = scmp.le.s32.totalorder 1, %s9
    %p112 = scmp.lt.s32.totalorder %s9, 5
    %p113 = pnand %p111, %p112
    %p114 = pneg %p113
    // Predicated region
    $region9: #{tpu_custom_call.1} parent=5 // pred_check
      _
    $region10: #{tpu_custom_call.1} parent=5 // pred_check_branch
      %116 = sbr.rel (%p113) target = $region12
    $region11: #{tpu_custom_call.1} parent=5 // pred_region
      %s117 = ssub.s32 %s9, 1
      // Predicated region
      $region13: #{tpu_custom_call.1} parent=11 // pred_check
        %p118 = pneg %p56
      $region14: #{tpu_custom_call.1} parent=11 // pred_check_branch
        %120 = sbr.rel (%p118) target = $region16
      $region15: #{tpu_custom_call.1} parent=11 // pred_region
        _
      $region16: #{tpu_custom_call.1} parent=11 // pred_fallthru
        _
      // Predicated region
      $region17: #{tpu_custom_call.1} parent=11 // pred_check
        %p121 = pneg %p77
      $region18: #{tpu_custom_call.1} parent=11 // pred_check_branch
        %123 = sbr.rel (%p121) target = $region20
      $region19: #{tpu_custom_call.1} parent=11 // pred_region
        _
      $region20: #{tpu_custom_call.1} parent=11 // pred_fallthru
        _
    $region12: #{tpu_custom_call.1} parent=5 // pred_fallthru
      _
    %p124 = scmp.lt.s32.totalorder %s9, 4
    // Predicated region
    $region21: #{tpu_custom_call.1} parent=5 // pred_check
      %p125 = pneg %p124
    $region22: #{tpu_custom_call.1} parent=5 // pred_check_branch
      %127 = sbr.rel (%p125) target = $region24
    $region23: #{tpu_custom_call.1} parent=5 // pred_region
      // Predicated region
      $region25: #{tpu_custom_call.1} parent=23 // pred_check
        %p128 = pneg %p29
      $region26: #{tpu_custom_call.1} parent=23 // pred_check_branch
        %130 = sbr.rel (%p128) target = $region28
      $region27: #{tpu_custom_call.1} parent=23 // pred_region
        %s131 = smul.u32 16, %s9
        %p132 = scmp.lt.s32.totalorder %s131, 63
        %s133 = scalar_select %p132, %s131, 63
        %s134 = smul.addr %s133, 4
        %s135 = scalar_lea.vmem %s0, %s134
        %s136 = smul.u32 16, %s9
      $region28: #{tpu_custom_call.1} parent=23 // pred_fallthru
        _
    $region24: #{tpu_custom_call.1} parent=5 // pred_fallthru
      _
    %p137 = scmp.le.s32.totalorder 1, %s9
    %p138 = scmp.lt.s32.totalorder %s9, 5
    %p139 = pnand %p137, %p138
    %p140 = pneg %p139
    // Predicated region
    $region29: #{tpu_custom_call.1} parent=5 // pred_check
      _
    $region30: #{tpu_custom_call.1} parent=5 // pred_check_branch
      %142 = sbr.rel (%p139) target = $region32
    $region31: #{tpu_custom_call.1} parent=5 // pred_region
      %s143 = ssub.s32 %s9, 1
      %s144 = smul.u32 16, %s14
      %p145 = scmp.lt.s32.totalorder %s144, 63
      %s146 = scalar_select %p145, %s144, 63
      %s147 = smul.addr %s146, 4
      %s148 = scalar_lea.vmem %s0, %s147
      %p149 = pneg %p35
      %p150 = pneg %p32
      %p151 = pneg %p56
      %p152 = pneg %p53
      %p153 = pneg %p77
      %p154 = pneg %p74
      %p155 = pneg %p103
      %p156 = pneg %p100
      %s157 = smul.u32 16, %s14
      %p158 = scmp.lt.s32.totalorder %s157, 63
      %s159 = scalar_select %p158, %s157, 63
      %s160 = smul.addr %s159, 4
      %s161 = scalar_lea.vmem %s3, %s160
      %s162 = smul.u32 16, %s14
      %p163 = scmp.lt.s32.totalorder %s162, 63
      %s164 = scalar_select %p163, %s162, 63
      %s165 = smul.addr %s164, 4
      %s166 = scalar_lea.vmem %s0, %s165
      %s167 = smul.u32 16, %s14
      %s168 = smul.u32 16, %s14
      %p169 = scmp.lt.s32.totalorder %s168, 63
      %s170 = scalar_select %p169, %s168, 63
      %s171 = smul.addr %s170, 4
      %s172 = scalar_lea.vmem %s3, %s171
      %s173 = smul.u32 16, %s14
      %v175 = vld [vmem:[%s166] sm:$0xf]
      %v176 = vld [vmem:[%s166 + $0x4] sm:$0xf]
      %v177 = vld [vmem:[%s166 + $0x8] sm:$0xf]
      %v178 = vld [vmem:[%s166 + $0xc] sm:$0xf]
      %v179 = vld [vmem:[%s166 + $0x10] sm:$0xf]
      %v180 = vld [vmem:[%s166 + $0x14] sm:$0xf]
      %v181 = vld [vmem:[%s166 + $0x18] sm:$0xf]
      %v182 = vld [vmem:[%s166 + $0x1c] sm:$0xf]
      %v183 = vld [vmem:[%s166 + $0x20] sm:$0xf]
      %v184 = vld [vmem:[%s166 + $0x24] sm:$0xf]
      %v185 = vld [vmem:[%s166 + $0x28] sm:$0xf]
      %v186 = vld [vmem:[%s166 + $0x2c] sm:$0xf]
      %v187 = vld [vmem:[%s166 + $0x30] sm:$0xf]
      %v188 = vld [vmem:[%s166 + $0x34] sm:$0xf]
      %v189 = vld [vmem:[%s166 + $0x38] sm:$0xf]
      %v190 = vld [vmem:[%s166 + $0x3c] sm:$0xf]
      %v191 = vld [vmem:[%s1] sm:$0xf]
      %v192 = vld [vmem:[%s2] sm:$0x1]
      %v194 = vlaneseq
      %v195 = vshrl.u32 %v194, 7
      %v196 = vsub.s32 0, %v195
      %v197 = vrot.slane %v192, %v196
      %v215 = vunpack.c.l.b16 %v175
      %v216 = vunpack.c.l.b16 %v176
      %v217 = vunpack.c.l.b16 %v177
      %v218 = vunpack.c.l.b16 %v178
      %v219 = vunpack.c.l.b16 %v179
      %v220 = vunpack.c.l.b16 %v180
      %v221 = vunpack.c.l.b16 %v181
      %v222 = vunpack.c.l.b16 %v182
      %v223 = vunpack.c.l.b16 %v183
      %v224 = vunpack.c.l.b16 %v184
      %v225 = vunpack.c.l.b16 %v185
      %v226 = vunpack.c.l.b16 %v186
      %v227 = vunpack.c.l.b16 %v187
      %v228 = vunpack.c.l.b16 %v188
      %v229 = vunpack.c.l.b16 %v189
      %v230 = vunpack.c.l.b16 %v190
      %v231 = vpack.c.b16 %v216, %v215
      %v232 = vpack.c.b16 %v218, %v217
      %v233 = vpack.c.b16 %v220, %v219
      %v234 = vpack.c.b16 %v222, %v221
      %v235 = vpack.c.b16 %v224, %v223
      %v236 = vpack.c.b16 %v226, %v225
      %v237 = vpack.c.b16 %v228, %v227
      %v238 = vpack.c.b16 %v230, %v229
      %vm239 = vcmask 64512
      %v241 = vsel %vm239, %v231, 0
      %v244 = vsel %vm239, %v232, 0
      %v247 = vsel %vm239, %v233, 0
      %v250 = vsel %vm239, %v234, 0
      %v253 = vsel %vm239, %v235, 0
      %v256 = vsel %vm239, %v236, 0
      %v259 = vsel %vm239, %v237, 0
      %v262 = vsel %vm239, %v238, 0
      %vm264 = vcmask 1043456
      %v266 = vsel %vm264, %v191, 0
      %268 = vmatprep.subr.bf16.mxu0 0
      %269 = vmatpush1.bf16.msra.mxu0 0
      %270 = vmatprep.subr.bf16.mxu0 0
      %271 = vmatpush1.bf16.msra.mxu0 0
      %272 = vmatprep.subr.bf16.mxu0 0
      %273 = vmatpush1.bf16.msra.mxu0 0
      %274 = vmatprep.subr.bf16.mxu0 0
      %275 = vmatpush1.bf16.msra.mxu0 0
      %276 = vmatprep.subr.bf16.mxu0 0
      %277 = vmatpush1.bf16.msra.mxu0 0
      %278 = vmatprep.subr.bf16.mxu0 0
      %279 = vmatpush1.bf16.msra.mxu0 0
      %280 = vmatprep.subr.bf16.mxu0 0
      %281 = vmatpush1.bf16.msra.mxu0 0
      %282 = vmatprep.subr.bf16.mxu0 0
      %283 = vmatpush1.bf16.msra.mxu0 %v266
      %284 = vmatprep.subr.bf16.mxu0 0
      %285 = vmatpush2.bf16.msra.mxu0 0
      %286 = vmatprep.subr.bf16.mxu0 0
      %287 = vmatpush2.bf16.msra.mxu0 0
      %288 = vmatprep.subr.bf16.mxu0 0
      %289 = vmatpush2.bf16.msra.mxu0 0
      %290 = vmatprep.subr.bf16.mxu0 0
      %291 = vmatpush2.bf16.msra.mxu0 0
      %292 = vmatprep.subr.bf16.mxu0 0
      %293 = vmatpush2.bf16.msra.mxu0 0
      %294 = vmatprep.subr.bf16.mxu0 0
      %295 = vmatpush2.bf16.msra.mxu0 0
      %296 = vmatprep.subr.bf16.mxu0 0
      %297 = vmatpush2.bf16.msra.mxu0 0
      %298 = vmatprep.subr.bf16.mxu0 0
      %299 = vmatpush2.bf16.msra.mxu0 0
      %300 = vmatprep.mubr.bf16.mxu0 0
      %301 = vmatmul.mubr.bf16.gmra.mxu0 %v241
      %v302 = vpop.f32.mrf.mxu0
      %v303 = vadd.f32 %v197, %v302
      %v304 = vpop.f32.mrf.mxu0
      %v305 = vpop.f32.mrf.mxu0
      %v306 = vadd.f32 %v197, %v305
      %v307 = vpop.f32.mrf.mxu0
      %308 = vmatprep.mubr.bf16.mxu0 0
      %309 = vmatmul.mubr.bf16.gmra.mxu0 %v244
      %v310 = vpop.f32.mrf.mxu0
      %v311 = vadd.f32 %v197, %v310
      %v312 = vpop.f32.mrf.mxu0
      %v313 = vpop.f32.mrf.mxu0
      %v314 = vadd.f32 %v197, %v313
      %v315 = vpop.f32.mrf.mxu0
      %316 = vmatprep.mubr.bf16.mxu0 0
      %317 = vmatmul.mubr.bf16.gmra.mxu0 %v247
      %v318 = vpop.f32.mrf.mxu0
      %v319 = vadd.f32 %v197, %v318
      %v320 = vpop.f32.mrf.mxu0
      %v321 = vpop.f32.mrf.mxu0
      %v322 = vadd.f32 %v197, %v321
      %v323 = vpop.f32.mrf.mxu0
      %324 = vmatprep.mubr.bf16.mxu0 0
      %325 = vmatmul.mubr.bf16.gmra.mxu0 %v250
      %v326 = vpop.f32.mrf.mxu0
      %v327 = vadd.f32 %v197, %v326
      %v328 = vpop.f32.mrf.mxu0
      %v329 = vpop.f32.mrf.mxu0
      %v330 = vadd.f32 %v197, %v329
      %v331 = vpop.f32.mrf.mxu0
      %332 = vmatprep.mubr.bf16.mxu0 0
      %333 = vmatmul.mubr.bf16.gmra.mxu0 %v253
      %v334 = vpop.f32.mrf.mxu0
      %v335 = vadd.f32 %v197, %v334
      %v336 = vpop.f32.mrf.mxu0
      %v337 = vpop.f32.mrf.mxu0
      %v338 = vadd.f32 %v197, %v337
      %v339 = vpop.f32.mrf.mxu0
      %340 = vmatprep.mubr.bf16.mxu0 0
      %341 = vmatmul.mubr.bf16.gmra.mxu0 %v256
      %v342 = vpop.f32.mrf.mxu0
      %v343 = vadd.f32 %v197, %v342
      %v344 = vpop.f32.mrf.mxu0
      %v345 = vpop.f32.mrf.mxu0
      %v346 = vadd.f32 %v197, %v345
      %v347 = vpop.f32.mrf.mxu0
      %348 = vmatprep.mubr.bf16.mxu0 0
      %349 = vmatmul.mubr.bf16.gmra.mxu0 %v259
      %v350 = vpop.f32.mrf.mxu0
      %v351 = vadd.f32 %v197, %v350
      %v352 = vpop.f32.mrf.mxu0
      %v353 = vpop.f32.mrf.mxu0
      %v354 = vadd.f32 %v197, %v353
      %v355 = vpop.f32.mrf.mxu0
      %356 = vmatprep.mubr.bf16.mxu0 0
      %357 = vmatmul.mubr.bf16.gmra.mxu0 %v262
      %v358 = vpop.f32.mrf.mxu0
      %v359 = vadd.f32 %v197, %v358
      %v360 = vpop.f32.mrf.mxu0
      %v361 = vpop.f32.mrf.mxu0
      %v362 = vadd.f32 %v197, %v361
      %v363 = vpop.f32.mrf.mxu0
      %364 = vdwg.mxu0
      %v365 = vmax.f32 %v303, 0.0
      %v366 = vmax.f32 %v306, 0.0
      %v367 = vmax.f32 %v311, 0.0
      %v368 = vmax.f32 %v314, 0.0
      %v369 = vmax.f32 %v319, 0.0
      %v370 = vmax.f32 %v322, 0.0
      %v371 = vmax.f32 %v327, 0.0
      %v372 = vmax.f32 %v330, 0.0
      %v373 = vmax.f32 %v335, 0.0
      %v374 = vmax.f32 %v338, 0.0
      %v375 = vmax.f32 %v343, 0.0
      %v376 = vmax.f32 %v346, 0.0
      %v377 = vmax.f32 %v351, 0.0
      %v378 = vmax.f32 %v354, 0.0
      %v379 = vmax.f32 %v359, 0.0
      %v380 = vmax.f32 %v362, 0.0
      %v381 = vpack.c.bf16 %v366, %v365
      %v382 = vpack.c.bf16 %v368, %v367
      %v383 = vpack.c.bf16 %v370, %v369
      %v384 = vpack.c.bf16 %v372, %v371
      %v385 = vpack.c.bf16 %v374, %v373
      %v386 = vpack.c.bf16 %v376, %v375
      %v387 = vpack.c.bf16 %v378, %v377
      %v388 = vpack.c.bf16 %v380, %v379
      %v397 = vunpack.c.l.b16 %v381
      %v398 = vunpack.c.h.b16 %v381
      %v399 = vunpack.c.l.b16 %v382
      %v400 = vunpack.c.h.b16 %v382
      %v401 = vunpack.c.l.b16 %v383
      %v402 = vunpack.c.h.b16 %v383
      %v403 = vunpack.c.l.b16 %v384
      %v404 = vunpack.c.h.b16 %v384
      %v405 = vunpack.c.l.b16 %v385
      %v406 = vunpack.c.h.b16 %v385
      %v407 = vunpack.c.l.b16 %v386
      %v408 = vunpack.c.h.b16 %v386
      %v409 = vunpack.c.l.b16 %v387
      %v410 = vunpack.c.h.b16 %v387
      %v411 = vunpack.c.l.b16 %v388
      %v412 = vunpack.c.h.b16 %v388
      %v413 = vpack.c.b16 %v397, %v397
      %v414 = vpack.c.b16 %v398, %v398
      %v415 = vpack.c.b16 %v399, %v399
      %v416 = vpack.c.b16 %v400, %v400
      %v417 = vpack.c.b16 %v401, %v401
      %v418 = vpack.c.b16 %v402, %v402
      %v419 = vpack.c.b16 %v403, %v403
      %v420 = vpack.c.b16 %v404, %v404
      %v421 = vpack.c.b16 %v405, %v405
      %v422 = vpack.c.b16 %v406, %v406
      %v423 = vpack.c.b16 %v407, %v407
      %v424 = vpack.c.b16 %v408, %v408
      %v425 = vpack.c.b16 %v409, %v409
      %v426 = vpack.c.b16 %v410, %v410
      %v427 = vpack.c.b16 %v411, %v411
      %v428 = vpack.c.b16 %v412, %v412
      %vm445 = vcmask 27648
      %446 = vst.msk [vmem:[%s172] sm:$0xf] %vm445, %v413
      %447 = vst.msk [vmem:[%s172 + $0x4] sm:$0xf] %vm445, %v414
      %448 = vst.msk [vmem:[%s172 + $0x8] sm:$0xf] %vm445, %v415
      %449 = vst.msk [vmem:[%s172 + $0xc] sm:$0xf] %vm445, %v416
      %450 = vst.msk [vmem:[%s172 + $0x10] sm:$0xf] %vm445, %v417
      %451 = vst.msk [vmem:[%s172 + $0x14] sm:$0xf] %vm445, %v418
      %452 = vst.msk [vmem:[%s172 + $0x18] sm:$0xf] %vm445, %v419
      %453 = vst.msk [vmem:[%s172 + $0x1c] sm:$0xf] %vm445, %v420
      %454 = vst.msk [vmem:[%s172 + $0x20] sm:$0xf] %vm445, %v421
      %455 = vst.msk [vmem:[%s172 + $0x24] sm:$0xf] %vm445, %v422
      %456 = vst.msk [vmem:[%s172 + $0x28] sm:$0xf] %vm445, %v423
      %457 = vst.msk [vmem:[%s172 + $0x2c] sm:$0xf] %vm445, %v424
      %458 = vst.msk [vmem:[%s172 + $0x30] sm:$0xf] %vm445, %v425
      %459 = vst.msk [vmem:[%s172 + $0x34] sm:$0xf] %vm445, %v426
      %460 = vst.msk [vmem:[%s172 + $0x38] sm:$0xf] %vm445, %v427
      %461 = vst.msk [vmem:[%s172 + $0x3c] sm:$0xf] %vm445, %v428
      %s462 = smul.u32 16, %s14
      %p463 = scmp.lt.s32.totalorder %s462, 63
      %s464 = scalar_select %p463, %s462, 63
      %s465 = smul.addr %s464, 4
      %s466 = scalar_lea.vmem %s3, %s465
      // Predicated region
      $region33: #{tpu_custom_call.1} parent=31 // pred_check
        %p467 = pneg %p100
      $region34: #{tpu_custom_call.1} parent=31 // pred_check_branch
        %469 = sbr.rel (%p467) target = $region36
      $region35: #{tpu_custom_call.1} parent=31 // pred_region
        %s470 = smul.u32 16, %s14
      $region36: #{tpu_custom_call.1} parent=31 // pred_fallthru
        _
    $region32: #{tpu_custom_call.1} parent=5 // pred_fallthru
      _
    %p471 = scmp.le.s32.totalorder 2, %s9
    // Predicated region
    $region37: #{tpu_custom_call.1} parent=5 // pred_check
      %p472 = pneg %p471
    $region38: #{tpu_custom_call.1} parent=5 // pred_check_branch
      %474 = sbr.rel (%p472) target = $region40
    $region39: #{tpu_custom_call.1} parent=5 // pred_region
      %s475 = ssub.s32 %s9, 2
      // Predicated region
      $region41: #{tpu_custom_call.1} parent=39 // pred_check
        %p476 = pneg %p106
      $region42: #{tpu_custom_call.1} parent=39 // pred_check_branch
        %478 = sbr.rel (%p476) target = $region44
      $region43: #{tpu_custom_call.1} parent=39 // pred_region
        %s479 = smul.u32 16, %s15
        %p480 = scmp.lt.s32.totalorder %s479, 63
        %s481 = scalar_select %p480, %s479, 63
        %s482 = smul.addr %s481, 4
        %s483 = scalar_lea.vmem %s3, %s482
      $region44: #{tpu_custom_call.1} parent=39 // pred_fallthru
        _
    $region40: #{tpu_custom_call.1} parent=5 // pred_fallthru
      _
  $region6: #{tpu_custom_call.1} parent=0 // loop_footer
    %s13 = sadd.s32 1, %s9
  $region7: #{tpu_custom_call.1} parent=0 // loop_footer_branch
    %8 = sbr.rel target = $region3
  $region8: #{tpu_custom_call.1} parent=0 // loop_exit
    _

</llo_original>
